<compile_context>
chip_gen: v6e
topology: v6e:2x2x1
jax: 0.10.0
libtpu: 0.0.40
codegen_flags: <defaults>
</compile_context>

<pallas_src>
import jax
import jax.numpy as jnp
from jax.experimental import pallas as pl
from jax.experimental.pallas import tpu as pltpu


# ---------------------------------------------------------------------------
# Fused kernel: squeeze + FC1/ReLU + FC2/sigmoid + excite for one (Bt, C, L)
# ---------------------------------------------------------------------------
def _se_fused_kernel(x_ref, w1t_ref, b1_ref, w2t_ref, b2_ref, o_ref):
    # x_ref: (Bt, C, L) native dtype
    # w1t:   (C, Cr) f32   b1: (1, Cr) f32
    # w2t:   (Cr, C) f32   b2: (1, C)  f32

    # Squeeze: mean over L, accumulated in f32 *without* materializing a
    # long-lived f32 copy of the whole slab (convert fuses into the reduce).
    m = jnp.mean(x_ref[...], axis=2, dtype=jnp.float32)                   # (Bt, C)

    # FCs batched over the Bt samples of this block: (Bt,C)@(C,Cr) then
    # (Bt,Cr)@(Cr,C) -- never a padded N=1 matvec.  Squeeze math stays in f32
    # on every generation (v5e has no bf16 VPU/EUP anyway).
    h = jnp.dot(m, w1t_ref[...], preferred_element_type=jnp.float32) + b1_ref[...]
    h = jnp.maximum(h, 0.0)                                               # (Bt, Cr)
    s = jnp.dot(h, w2t_ref[...], preferred_element_type=jnp.float32) + b2_ref[...]
    s = jax.nn.sigmoid(s)                                                 # (Bt, C)

    # Excite in the native dtype (keeps VMEM/vreg pressure at 1x the slab).
    o_ref[...] = x_ref[...] * s[:, :, None].astype(o_ref.dtype)


# ---------------------------------------------------------------------------
# Streaming excite kernel: out = x * s, with s broadcast over L
# ---------------------------------------------------------------------------
def _se_excite_kernel(x_ref, s_ref, o_ref):
    # x_ref: (Bt, Ct, Lt) native dtype; s_ref: (Bt, Ct, 1) f32
    o_ref[...] = x_ref[...] * s_ref[...].astype(o_ref.dtype)


# ---------------------------------------------------------------------------
# Tiling helpers
# ---------------------------------------------------------------------------
def _lane_tile(dim, cap=512):
    """Trailing-axis (lane) tile: full dim if it is small enough, otherwise a
    multiple of 128 so stores are lane-dense/unmasked."""
    if dim <= cap:
        return dim
    return (cap // 128) * 128


def _sublane_tile(dim, cap=1024):
    """Second-minor (sublane) tile: full dim if small, else a multiple of 8."""
    if dim <= cap:
        return dim
    return (cap // 8) * 8


def _squeeze_scales_xla(x, w1, b1, w2, b2):
    """Squeeze + FC1/ReLU + FC2/sigmoid as plain JAX (tiny reduction+matmuls)."""
    m = jnp.mean(x, axis=2, dtype=jnp.float32)                            # (B, C)
    h = jax.nn.relu(m @ w1.T.astype(jnp.float32) + b1.astype(jnp.float32)[None, :])
    s = jax.nn.sigmoid(h @ w2.T.astype(jnp.float32) + b2.astype(jnp.float32)[None, :])
    return s[:, :, None]                                                  # (B, C, 1) f32


# ---------------------------------------------------------------------------
# Wrapper
# ---------------------------------------------------------------------------
def se_block(x, w1, b1, w2, b2, *, fused_block_budget_bytes=8 << 20):
    """SEBlock forward.  x: (B, C, L); w1: (Cr, C); b1: (Cr,); w2: (C, Cr); b2: (C,)."""
    B, C, L = x.shape
    Cr = w1.shape[0]
    itemsize = jnp.dtype(x.dtype).itemsize
    per_sample_bytes = C * L * itemsize

    # ---- Path 1: fused single kernel (whole (Bt, C, L) slab resident) ------
    # Budget counts input + output, each double-buffered (~4x one block), and
    # is sized for v7x's smaller scoped-VMEM default; v5e/v6e have headroom.
    if 4 * per_sample_bytes <= fused_block_budget_bytes:
        bt = max(1, min(B, fused_block_budget_bytes // (4 * per_sample_bytes)))
        w1t = w1.T.astype(jnp.float32)               # (C, Cr)
        b1r = b1.astype(jnp.float32).reshape(1, Cr)
        w2t = w2.T.astype(jnp.float32)               # (Cr, C)
        b2r = b2.astype(jnp.float32).reshape(1, C)
        return pl.pallas_call(
            _se_fused_kernel,
            out_shape=jax.ShapeDtypeStruct((B, C, L), x.dtype),
            grid=(pl.cdiv(B, bt),),
            in_specs=[
                pl.BlockSpec((bt, C, L), lambda b: (b, 0, 0)),   # x (batch tile)
                pl.BlockSpec((C, Cr), lambda b: (0, 0)),         # w1.T (full)
                pl.BlockSpec((1, Cr), lambda b: (0, 0)),         # b1
                pl.BlockSpec((Cr, C), lambda b: (0, 0)),         # w2.T (full)
                pl.BlockSpec((1, C), lambda b: (0, 0)),          # b2
            ],
            out_specs=pl.BlockSpec((bt, C, L), lambda b: (b, 0, 0)),
            compiler_params=pltpu.CompilerParams(
                dimension_semantics=("parallel",)),              # 2 TCs on v7x
        )(x, w1t, b1r, w2t, b2r)

    # ---- Path 2: two passes -------------------------------------------------
    # The squeeze needs all of C and L per sample, so a single pass would force
    # full-slab VMEM residency.  Doing the (tiny) squeeze+FCs in XLA and only
    # streaming the excite in Pallas lets us pick roofline-friendly lane-dense
    # tiles on every generation, at the cost of one extra HBM read of x.
    s = _squeeze_scales_xla(x, w1, b1, w2, b2)                   # (B, C, 1) f32

    lt = _lane_tile(L)         # multiple of 128 whenever L is tiled
    ct = _sublane_tile(C)
    block_budget = 2 << 20     # ~2 MiB per x block; ~4x with in/out double-buffering
    bt = max(1, min(B, block_budget // max(1, ct * lt * itemsize)))
    # NOTE: for L < 128 the trailing store is still a masked partial vst; a
    # lane-dense fold of (C, L) -> (C*L,) would require an in-kernel relayout
    # of the broadcast scale, which is not worth the risk at these sizes.

    return pl.pallas_call(
        _se_excite_kernel,
        out_shape=jax.ShapeDtypeStruct((B, C, L), x.dtype),
        grid=(pl.cdiv(B, bt), pl.cdiv(C, ct), pl.cdiv(L, lt)),
        in_specs=[
            pl.BlockSpec((bt, ct, lt), lambda bi, ci, li: (bi, ci, li)),  # x
            pl.BlockSpec((bt, ct, 1), lambda bi, ci, li: (bi, ci, 0)),    # s
        ],
        out_specs=pl.BlockSpec((bt, ct, lt), lambda bi, ci, li: (bi, ci, li)),
        compiler_params=pltpu.CompilerParams(
            dimension_semantics=("parallel", "parallel", "parallel")),
    )(x, s)


# ---------------------------------------------------------------------------
# Pure-JAX reference mirroring the PyTorch forward
# ---------------------------------------------------------------------------
def _reference(x, w1, b1, w2, b2):
    m = jnp.mean(x, axis=2, keepdims=True)                                  # (B, C, 1)
    h = jax.nn.relu(jnp.einsum('rc,bcl->brl', w1, m) + b1[None, :, None])
    s = jax.nn.sigmoid(jnp.einsum('cr,brl->bcl', w2, h) + b2[None, :, None])
    return x * s


if __name__ == "__main__":
    # Module config (matches SEBlock(input_filters, se_ratio))
    input_filters = 8
    se_ratio = 0.25
    num_reduced = max(1, int(input_filters * se_ratio))   # = 2

    B, C, L = 2, input_filters, 16

    key = jax.random.PRNGKey(0)
    kx, k1, k2, k3, k4, kx2 = jax.random.split(key, 6)

    x = jax.random.normal(kx, (B, C, L), dtype=jnp.float32)

    # Deterministic parameter init (Conv1d kernel_size=1 -> plain matmul weights),
    # mimicking PyTorch's uniform(-1/sqrt(fan_in), 1/sqrt(fan_in)).
    bound1 = 1.0 / (C ** 0.5)
    w1 = jax.random.uniform(k1, (num_reduced, C), jnp.float32, -bound1, bound1)
    b1 = jax.random.uniform(k2, (num_reduced,), jnp.float32, -bound1, bound1)
    bound2 = 1.0 / (num_reduced ** 0.5)
    w2 = jax.random.uniform(k3, (C, num_reduced), jnp.float32, -bound2, bound2)
    b2 = jax.random.uniform(k4, (C,), jnp.float32, -bound2, bound2)

    # Path 1: fused single-kernel (the module's typical small-slab regime).
    out = jax.block_until_ready(se_block(x, w1, b1, w2, b2))
    ref = _reference(x, w1, b1, w2, b2)
    assert out.shape == (B, C, L)
    assert jnp.allclose(out, ref, atol=1e-5, rtol=1e-5), "fused path mismatch"

    # Path 2: two-pass streaming excite, forced via a zero fused budget and run
    # at an L that exercises the lane-dense (multiple-of-128) tiling.
    L2 = 256
    x2 = jax.random.normal(kx2, (B, C, L2), dtype=jnp.float32)
    out2 = jax.block_until_ready(
        se_block(x2, w1, b1, w2, b2, fused_block_budget_bytes=0))
    ref2 = _reference(x2, w1, b1, w2, b2)
    assert out2.shape == (B, C, L2)
    assert jnp.allclose(out2, ref2, atol=1e-5, rtol=1e-5), "streaming path mismatch"

    print("KERNEL_OK")
</pallas_src>

<mosaic_0001>
module attributes {stable_mosaic.version = 11 : i64} {
  func.func @_se_fused_kernel(%arg0: i32, %arg1: memref<2x8x16xf32, #tpu.memory_space<vmem>>, %arg2: memref<8x2xf32, #tpu.memory_space<vmem>>, %arg3: memref<1x2xf32, #tpu.memory_space<vmem>>, %arg4: memref<2x8xf32, #tpu.memory_space<vmem>>, %arg5: memref<1x8xf32, #tpu.memory_space<vmem>>, %arg6: memref<2x8x16xf32, #tpu.memory_space<vmem>>) attributes {dimension_semantics = [#tpu.dimension_semantics<parallel>], iteration_bounds = array<i64: 1>, scalar_prefetch = 0 : i64, scratch_operands = 0 : i64, tpu.core_type = #tpu.core_type<tc>, window_params = [{transform_indices = @transform_0, window_bounds = array<i64: 2, 8, 16>}, {pipeline_mode = #tpu.pipeline_mode<synchronous>, transform_indices = @transform_1, window_bounds = array<i64: 8, 2>}, {pipeline_mode = #tpu.pipeline_mode<synchronous>, transform_indices = @transform_2, window_bounds = array<i64: 1, 2>}, {pipeline_mode = #tpu.pipeline_mode<synchronous>, transform_indices = @transform_3, window_bounds = array<i64: 2, 8>}, {pipeline_mode = #tpu.pipeline_mode<synchronous>, transform_indices = @transform_4, window_bounds = array<i64: 1, 8>}, {transform_indices = @transform_5, window_bounds = array<i64: 2, 8, 16>}]} {
    %c0 = arith.constant 0 : index
    %c0_0 = arith.constant 0 : index
    %c0_1 = arith.constant 0 : index
    %0 = vector.load %arg1[%c0, %c0_0, %c0_1] : memref<2x8x16xf32, #tpu.memory_space<vmem>>, vector<2x8x16xf32>
    %cst = arith.constant dense<0.000000e+00> : vector<2x8xf32>
    %1 = vector.multi_reduction <add>, %0, %cst [2] : vector<2x8x16xf32> to vector<2x8xf32>
    %cst_2 = arith.constant 1.600000e+01 : f32
    %2 = vector.broadcast %cst_2 : f32 to vector<2x8xf32>
    %3 = arith.divf %1, %2 : vector<2x8xf32>
    %c0_3 = arith.constant 0 : index
    %c0_4 = arith.constant 0 : index
    %4 = vector.load %arg2[%c0_3, %c0_4] : memref<8x2xf32, #tpu.memory_space<vmem>>, vector<8x2xf32>
    %cst_5 = arith.constant dense<0.000000e+00> : vector<2x2xf32>
    %5 = tpu.matmul %3, %4, %cst_5 {dimension_numbers = #tpu.dot_dimension_numbers<[1], [0], [0], [1], [0, 0, 1, 1], [], []>} : vector<2x8xf32>, vector<8x2xf32>, vector<2x2xf32> -> vector<2x2xf32>
    %c0_6 = arith.constant 0 : index
    %c0_7 = arith.constant 0 : index
    %6 = vector.load %arg3[%c0_6, %c0_7] : memref<1x2xf32, #tpu.memory_space<vmem>>, vector<1x2xf32>
    %7 = vector.broadcast %6 : vector<1x2xf32> to vector<2x2xf32>
    %8 = arith.addf %5, %7 : vector<2x2xf32>
    %cst_8 = arith.constant 0.000000e+00 : f32
    %9 = vector.broadcast %cst_8 : f32 to vector<2x2xf32>
    %10 = arith.maximumf %8, %9 : vector<2x2xf32>
    %c0_9 = arith.constant 0 : index
    %c0_10 = arith.constant 0 : index
    %11 = vector.load %arg4[%c0_9, %c0_10] : memref<2x8xf32, #tpu.memory_space<vmem>>, vector<2x8xf32>
    %cst_11 = arith.constant dense<0.000000e+00> : vector<2x8xf32>
    %12 = tpu.matmul %10, %11, %cst_11 {dimension_numbers = #tpu.dot_dimension_numbers<[1], [0], [0], [1], [0, 0, 1, 1], [], []>} : vector<2x2xf32>, vector<2x8xf32>, vector<2x8xf32> -> vector<2x8xf32>
    %c0_12 = arith.constant 0 : index
    %c0_13 = arith.constant 0 : index
    %13 = vector.load %arg5[%c0_12, %c0_13] : memref<1x8xf32, #tpu.memory_space<vmem>>, vector<1x8xf32>
    %14 = vector.broadcast %13 : vector<1x8xf32> to vector<2x8xf32>
    %15 = arith.addf %12, %14 : vector<2x8xf32>
    %16 = arith.negf %15 : vector<2x8xf32>
    %17 = math.exp %16 : vector<2x8xf32>
    %cst_14 = arith.constant 1.000000e+00 : f32
    %18 = vector.broadcast %cst_14 : f32 to vector<2x8xf32>
    %19 = arith.addf %18, %17 : vector<2x8xf32>
    %20 = arith.divf %18, %19 : vector<2x8xf32>
    %c0_15 = arith.constant 0 : index
    %c0_16 = arith.constant 0 : index
    %c0_17 = arith.constant 0 : index
    %21 = vector.load %arg1[%c0_15, %c0_16, %c0_17] : memref<2x8x16xf32, #tpu.memory_space<vmem>>, vector<2x8x16xf32>
    %22 = vector.shape_cast %20 : vector<2x8xf32> to vector<2x8x1xf32>
    %23 = vector.broadcast %22 : vector<2x8x1xf32> to vector<2x8x16xf32>
    %24 = arith.mulf %21, %23 : vector<2x8x16xf32>
    %c0_18 = arith.constant 0 : index
    %c0_19 = arith.constant 0 : index
    %c0_20 = arith.constant 0 : index
    %25 = vector.load %arg6[%c0_18, %c0_19, %c0_20] : memref<2x8x16xf32, #tpu.memory_space<vmem>>, vector<2x8x16xf32>
    tpu.vector_store %arg6[%c0_18, %c0_19, %c0_20], %24 {strides = array<i32>} : memref<2x8x16xf32, #tpu.memory_space<vmem>>, vector<2x8x16xf32>,
    return
  }
  func.func @transform_0(%arg0: i32) -> (i32, i32, i32) {
    %c0_i32 = arith.constant 0 : i32
    %c0_i32_0 = arith.constant 0 : i32
    %c0_i32_1 = arith.constant 0 : i32
    return %arg0, %c0_i32, %c0_i32_0 : i32, i32, i32
  }
  func.func @transform_1(%arg0: i32) -> (i32, i32) {
    %c0_i32 = arith.constant 0 : i32
    %c0_i32_0 = arith.constant 0 : i32
    %c0_i32_1 = arith.constant 0 : i32
    return %c0_i32, %c0_i32_0 : i32, i32
  }
  func.func @transform_2(%arg0: i32) -> (i32, i32) {
    %c0_i32 = arith.constant 0 : i32
    %c0_i32_0 = arith.constant 0 : i32
    %c0_i32_1 = arith.constant 0 : i32
    return %c0_i32, %c0_i32_0 : i32, i32
  }
  func.func @transform_3(%arg0: i32) -> (i32, i32) {
    %c0_i32 = arith.constant 0 : i32
    %c0_i32_0 = arith.constant 0 : i32
    %c0_i32_1 = arith.constant 0 : i32
    return %c0_i32, %c0_i32_0 : i32, i32
  }
  func.func @transform_4(%arg0: i32) -> (i32, i32) {
    %c0_i32 = arith.constant 0 : i32
    %c0_i32_0 = arith.constant 0 : i32
    %c0_i32_1 = arith.constant 0 : i32
    return %c0_i32, %c0_i32_0 : i32, i32
  }
  func.func @transform_5(%arg0: i32) -> (i32, i32, i32) {
    %c0_i32 = arith.constant 0 : i32
    %c0_i32_0 = arith.constant 0 : i32
    %c0_i32_1 = arith.constant 0 : i32
    return %arg0, %c0_i32, %c0_i32_0 : i32, i32, i32
  }
}

</mosaic_0001>

<llo_original>
// kernel: tpu_custom_call.1
$region0: #{tpu_custom_call.1}
  #allocation0 [shape = 'u32[]', space=smem, size = 0x4, offset = 0x4, fixed_abs, tag = 'smem constant byte address 0x4 - core index']
  #allocation1 [shape = 'u32[144,128]{1,0:T(1,128)}', space=vmem, size = 0x12000, scoped, tag = 'internal scratch']
  %s0 = inlined_call_operand.hbm [shape: f32[2,8,16], index: 0, kind: input, shape index: {}]
  %s1 = inlined_call_operand.vmem [shape: f32[8,2], index: 1, kind: input, shape index: {}]
  %s2 = inlined_call_operand.vmem [shape: f32[1,2], index: 2, kind: input, shape index: {}]
  %s3 = inlined_call_operand.vmem [shape: f32[2,8], index: 3, kind: input, shape index: {}]
  %s4 = inlined_call_operand.vmem [shape: f32[1,8], index: 4, kind: input, shape index: {}]
  %s5 = inlined_call_operand.hbm [shape: f32[2,8,16], index: 5, kind: output, shape index: {}]
  %s6 = sld [smem:[#allocation0]]
  $region34: #{tpu_custom_call.1} parent=0
    _
  %s8 = ssub.s32 1, %s6
  %s9 = scalar_select 0, %s8, %s6
  $region1: #{tpu_custom_call.1} parent=0
    #allocation2 [shape = 'u8[8192]{0}', space=vmem, size = 0x2000, scoped, tag = 'input window, operand 0, single buffered']
    #allocation3 [shape = 's32[1]{0}', space=sflag, size = 0x4, scoped, tag = 'scoped memory for tpu_custom_call.1']
    #allocation4 [shape = 's32[1]{0}', space=sflag, size = 0x4, scoped, tag = 'scoped memory for tpu_custom_call.1']
    #allocation5 [shape = 'u8[8192]{0}', space=vmem, size = 0x2000, scoped, tag = 'output window, operand 0, single buffered']
    %10 = vsyncpa [#allocation3], 0
    %11 = vsyncpa [#allocation4], 0
    // Predicated region
    $region2: #{tpu_custom_call.1} parent=1 // pred_check
      _
    $region3: #{tpu_custom_call.1} parent=1 // pred_check_branch
      %13 = sbr.rel (0) target = $region5
    $region4: #{tpu_custom_call.1} parent=1 // pred_region
      %s15 = ssub.s32 256, 256
      %16 = vsyncadd [#allocation3], %s15
      %s17 = sshll.u32 [#allocation2], 4
      %s18 = int_to_ptr.vmem [resolvable:$true] %s17
      %23 = dma.hbm_to_vmem [thread:$0]  %s0, 256, %s18, [#allocation3], 128, 128, 8
    $region5: #{tpu_custom_call.1} parent=1 // pred_fallthru
      _
    // Predicated region
    $region6: #{tpu_custom_call.1} parent=1 // pred_check
      _
    $region7: #{tpu_custom_call.1} parent=1 // pred_check_branch
      %25 = sbr.rel (0) target = $region9
    $region8: #{tpu_custom_call.1} parent=1 // pred_region
      _
    $region9: #{tpu_custom_call.1} parent=1 // pred_fallthru
      _
    // Predicated region
    $region10: #{tpu_custom_call.1} parent=1 // pred_check
      _
    $region11: #{tpu_custom_call.1} parent=1 // pred_check_branch
      %27 = sbr.rel (0) target = $region13
    $region12: #{tpu_custom_call.1} parent=1 // pred_region
      _
    $region13: #{tpu_custom_call.1} parent=1 // pred_fallthru
      _
    // Predicated region
    $region14: #{tpu_custom_call.1} parent=1 // pred_check
      _
    $region15: #{tpu_custom_call.1} parent=1 // pred_check_branch
      %29 = sbr.rel (0) target = $region17
    $region16: #{tpu_custom_call.1} parent=1 // pred_region
      _
    $region17: #{tpu_custom_call.1} parent=1 // pred_fallthru
      _
    // Predicated region
    $region18: #{tpu_custom_call.1} parent=1 // pred_check
      _
    $region19: #{tpu_custom_call.1} parent=1 // pred_check_branch
      %31 = sbr.rel (0) target = $region21
    $region20: #{tpu_custom_call.1} parent=1 // pred_region
      _
    $region21: #{tpu_custom_call.1} parent=1 // pred_fallthru
      _
    // Predicated region
    $region22: #{tpu_custom_call.1} parent=1 // pred_check
      _
    $region23: #{tpu_custom_call.1} parent=1 // pred_check_branch
      %33 = sbr.rel (0) target = $region25
    $region24: #{tpu_custom_call.1} parent=1 // pred_region
      %34 = dma.done [#allocation3], 256
    $region25: #{tpu_custom_call.1} parent=1 // pred_fallthru
      _
    %v35 = vld [vmem:[#allocation2] sm:$0xff]
    %v36 = vld [vmem:[#allocation2 + $0x8] sm:$0xff]
    %vm37 = vcmask 130048
    %v38 = vsel %vm37, %v35, 0.0
    %39 = vadd.xlane.f32.xlu0 %v38
    %v40 = vpop.xlane.xlu0 %39
    %v41 = vsel %vm37, %v36, 0.0
    %42 = vadd.xlane.f32.xlu0 %v41
    %v43 = vpop.xlane.xlu0 %42
    %v44 = vrcp.pop 16.0
    %v45 = vmul.f32 %v40, %v44
    %v46 = vmul.f32 %v43, %v44
    %v47 = vld [vmem:[%s1] sm:$0xff]
    %v48 = vld [vmem:[%s2] sm:$0x1]
    %v50 = vlaneseq
    %v51 = vshrl.u32 %v50, 7
    %v52 = vsub.s32 0, %v51
    %v53 = vrot.slane %v48, %v52
    %v57 = vlaneseq
    %v58 = vand.u32 %v57, 127
    %v59 = vlaneseq
    %v60 = vshrl.u32 %v59, 7
    %v61 = vsub.s32 %v58, %v60
    %v62 = vrot.slane %v45, %v61
    %v63 = vlaneseq
    %v64 = vshrl.u32 %v63, 7
    %v65 = vsub.s32 %v58, %v64
    %v66 = vrot.slane %v46, %v65
    %vm67 = vcmask 1041409
    %v68 = vsel %vm67, %v66, %v62
    %vm69 = vcmask 64512
    %v70 = vsel %vm69, %v68, 0
    %72 = vmatprep.subr.mxu0 0.0
    %73 = vmatpush1.msra.mxu0 0.0
    %74 = vmatprep.subr.mxu0 0.0
    %75 = vmatpush1.msra.mxu0 0.0
    %76 = vmatprep.subr.mxu0 0.0
    %77 = vmatpush1.msra.mxu0 0.0
    %78 = vmatprep.subr.mxu0 0.0
    %79 = vmatpush1.msra.mxu0 0.0
    %80 = vmatprep.subr.mxu0 0.0
    %81 = vmatpush1.msra.mxu0 0.0
    %82 = vmatprep.subr.mxu0 0.0
    %83 = vmatpush1.msra.mxu0 0.0
    %84 = vmatprep.subr.mxu0 0.0
    %85 = vmatpush1.msra.mxu0 0.0
    %86 = vmatprep.subr.mxu0 0.0
    %87 = vmatpush1.msra.mxu0 0.0
    %88 = vmatprep.subr.mxu0 0.0
    %89 = vmatpush1.msra.mxu0 0.0
    %90 = vmatprep.subr.mxu0 0.0
    %91 = vmatpush1.msra.mxu0 0.0
    %92 = vmatprep.subr.mxu0 0.0
    %93 = vmatpush1.msra.mxu0 0.0
    %94 = vmatprep.subr.mxu0 0.0
    %95 = vmatpush1.msra.mxu0 0.0
    %96 = vmatprep.subr.mxu0 0.0
    %97 = vmatpush1.msra.mxu0 0.0
    %98 = vmatprep.subr.mxu0 0.0
    %99 = vmatpush1.msra.mxu0 0.0
    %100 = vmatprep.subr.mxu0 0.0
    %101 = vmatpush1.msra.mxu0 0.0
    %102 = vmatprep.subr.mxu0 0.0
    %103 = vmatpush1.msra.mxu0 %v47
    %104 = vmatprep.subr.mxu0 0.0
    %105 = vmatpush2.msra.mxu0 0.0
    %106 = vmatprep.subr.mxu0 0.0
    %107 = vmatpush2.msra.mxu0 0.0
    %108 = vmatprep.subr.mxu0 0.0
    %109 = vmatpush2.msra.mxu0 0.0
    %110 = vmatprep.subr.mxu0 0.0
    %111 = vmatpush2.msra.mxu0 0.0
    %112 = vmatprep.subr.mxu0 0.0
    %113 = vmatpush2.msra.mxu0 0.0
    %114 = vmatprep.subr.mxu0 0.0
    %115 = vmatpush2.msra.mxu0 0.0
    %116 = vmatprep.subr.mxu0 0.0
    %117 = vmatpush2.msra.mxu0 0.0
    %118 = vmatprep.subr.mxu0 0.0
    %119 = vmatpush2.msra.mxu0 0.0
    %120 = vmatprep.subr.mxu0 0.0
    %121 = vmatpush2.msra.mxu0 0.0
    %122 = vmatprep.subr.mxu0 0.0
    %123 = vmatpush2.msra.mxu0 0.0
    %124 = vmatprep.subr.mxu0 0.0
    %125 = vmatpush2.msra.mxu0 0.0
    %126 = vmatprep.subr.mxu0 0.0
    %127 = vmatpush2.msra.mxu0 0.0
    %128 = vmatprep.subr.mxu0 0.0
    %129 = vmatpush2.msra.mxu0 0.0
    %130 = vmatprep.subr.mxu0 0.0
    %131 = vmatpush2.msra.mxu0 0.0
    %132 = vmatprep.subr.mxu0 0.0
    %133 = vmatpush2.msra.mxu0 0.0
    %134 = vmatprep.subr.mxu0 0.0
    %135 = vmatpush2.msra.mxu0 0.0
    %136 = vmatprep.mubr.f32.mxu0 0.0
    %137 = vmatmul.mubr.f32.gmra.mxu0 %v70
    %v138 = vpop.f32.mrf.mxu0
    %v139 = vadd.f32 %v53, %v138
    %v140 = vpop.f32.mrf.mxu0
    %141 = vdwg.mxu0
    %v142 = vmax.f32 %v139, 0.0
    %v143 = vld [vmem:[%s3] sm:$0x3]
    %v144 = vld [vmem:[%s4] sm:$0x1]
    %v146 = vlaneseq
    %v147 = vshrl.u32 %v146, 7
    %v148 = vsub.s32 0, %v147
    %v149 = vrot.slane %v144, %v148
    %vm151 = vcmask 15360
    %v153 = vsel %vm151, %v142, 0
    %vm155 = vcmask 1041408
    %v157 = vsel %vm155, %v143, 0
    %159 = vmatprep.subr.mxu0 0.0
    %160 = vmatpush1.msra.mxu0 0.0
    %161 = vmatprep.subr.mxu0 0.0
    %162 = vmatpush1.msra.mxu0 0.0
    %163 = vmatprep.subr.mxu0 0.0
    %164 = vmatpush1.msra.mxu0 0.0
    %165 = vmatprep.subr.mxu0 0.0
    %166 = vmatpush1.msra.mxu0 0.0
    %167 = vmatprep.subr.mxu0 0.0
    %168 = vmatpush1.msra.mxu0 0.0
    %169 = vmatprep.subr.mxu0 0.0
    %170 = vmatpush1.msra.mxu0 0.0
    %171 = vmatprep.subr.mxu0 0.0
    %172 = vmatpush1.msra.mxu0 0.0
    %173 = vmatprep.subr.mxu0 0.0
    %174 = vmatpush1.msra.mxu0 0.0
    %175 = vmatprep.subr.mxu0 0.0
    %176 = vmatpush1.msra.mxu0 0.0
    %177 = vmatprep.subr.mxu0 0.0
    %178 = vmatpush1.msra.mxu0 0.0
    %179 = vmatprep.subr.mxu0 0.0
    %180 = vmatpush1.msra.mxu0 0.0
    %181 = vmatprep.subr.mxu0 0.0
    %182 = vmatpush1.msra.mxu0 0.0
    %183 = vmatprep.subr.mxu0 0.0
    %184 = vmatpush1.msra.mxu0 0.0
    %185 = vmatprep.subr.mxu0 0.0
    %186 = vmatpush1.msra.mxu0 0.0
    %187 = vmatprep.subr.mxu0 0.0
    %188 = vmatpush1.msra.mxu0 0.0
    %189 = vmatprep.subr.mxu0 0.0
    %190 = vmatpush1.msra.mxu0 %v157
    %191 = vmatprep.subr.mxu0 0.0
    %192 = vmatpush2.msra.mxu0 0.0
    %193 = vmatprep.subr.mxu0 0.0
    %194 = vmatpush2.msra.mxu0 0.0
    %195 = vmatprep.subr.mxu0 0.0
    %196 = vmatpush2.msra.mxu0 0.0
    %197 = vmatprep.subr.mxu0 0.0
    %198 = vmatpush2.msra.mxu0 0.0
    %199 = vmatprep.subr.mxu0 0.0
    %200 = vmatpush2.msra.mxu0 0.0
    %201 = vmatprep.subr.mxu0 0.0
    %202 = vmatpush2.msra.mxu0 0.0
    %203 = vmatprep.subr.mxu0 0.0
    %204 = vmatpush2.msra.mxu0 0.0
    %205 = vmatprep.subr.mxu0 0.0
    %206 = vmatpush2.msra.mxu0 0.0
    %207 = vmatprep.subr.mxu0 0.0
    %208 = vmatpush2.msra.mxu0 0.0
    %209 = vmatprep.subr.mxu0 0.0
    %210 = vmatpush2.msra.mxu0 0.0
    %211 = vmatprep.subr.mxu0 0.0
    %212 = vmatpush2.msra.mxu0 0.0
    %213 = vmatprep.subr.mxu0 0.0
    %214 = vmatpush2.msra.mxu0 0.0
    %215 = vmatprep.subr.mxu0 0.0
    %216 = vmatpush2.msra.mxu0 0.0
    %217 = vmatprep.subr.mxu0 0.0
    %218 = vmatpush2.msra.mxu0 0.0
    %219 = vmatprep.subr.mxu0 0.0
    %220 = vmatpush2.msra.mxu0 0.0
    %221 = vmatprep.subr.mxu0 0.0
    %222 = vmatpush2.msra.mxu0 0.0
    %223 = vmatprep.mubr.f32.mxu0 0.0
    %224 = vmatmul.mubr.f32.gmra.mxu0 %v153
    %v225 = vpop.f32.mrf.mxu0
    %v226 = vadd.f32 %v149, %v225
    %v227 = vpop.f32.mrf.mxu0
    %228 = vdwg.mxu0
    %v229 = vxor.u32 %v226, 2147483648
    %v230 = vmul.f32 %v229, 1.442695
    %v231 = vpow.pop %v230
    %v232 = vadd.f32 %v231, 1.0
    %v233 = vrcp.pop %v232
    %v234 = vmul.f32 1.0, %v233
    %v235 = vlaneseq
    %v236 = vshrl.u32 %v235, 7
    %v237 = vsub.s32 0, %v236
    %v238 = vrot.slane %v234, %v237
    %240 = vbcast.lane.b32.xlu0 %v238, 256
    %v241 = vpop.permute.xlu0 %240
    %v242 = vlaneseq
    %v243 = vshrl.u32 %v242, 7
    %v244 = vsub.s32 1, %v243
    %v245 = vrot.slane %v234, %v244
    %247 = vbcast.lane.b32.xlu0 %v245, 256
    %v248 = vpop.permute.xlu0 %247
    %v249 = vmul.f32 %v35, %v241
    %v250 = vmul.f32 %v36, %v248
    %251 = vst.msk [vmem:[#allocation5] sm:$0xff] %vm37, %v249
    %252 = vst.msk [vmem:[#allocation5 + $0x8] sm:$0xff] %vm37, %v250
    // Predicated region
    $region26: #{tpu_custom_call.1} parent=1 // pred_check
      _
    $region27: #{tpu_custom_call.1} parent=1 // pred_check_branch
      %254 = sbr.rel (0) target = $region29
    $region28: #{tpu_custom_call.1} parent=1 // pred_region
      %s256 = ssub.s32 256, 256
      %257 = vsyncadd [#allocation4], %s256
      %s258 = sshll.u32 [#allocation5], 4
      %s259 = int_to_ptr.vmem [resolvable:$true] %s258
      %264 = dma.vmem_to_hbm [thread:$0]  %s259, 256, %s5, [#allocation4], 128, 128, 8
    $region29: #{tpu_custom_call.1} parent=1 // pred_fallthru
      _
    // Predicated region
    $region30: #{tpu_custom_call.1} parent=1 // pred_check
      _
    $region31: #{tpu_custom_call.1} parent=1 // pred_check_branch
      %266 = sbr.rel (0) target = $region33
    $region32: #{tpu_custom_call.1} parent=1 // pred_region
      %267 = dma.done [#allocation4], 256
    $region33: #{tpu_custom_call.1} parent=1 // pred_fallthru
      _
    %268 = vsyncpa [#allocation3], 1
    %269 = vsyncpa [#allocation4], 1

</llo_original>
